<compile_context>
chip_gen: v5e
topology: v5e:2x2
jax: 0.10.0
libtpu: 0.0.40
codegen_flags: <defaults>
</compile_context>

<pallas_src>
import math
import jax
import jax.numpy as jnp
from jax import lax
from jax.experimental import pallas as pl
from jax.experimental.pallas import tpu as pltpu


def _ffn_kernel(x_ref, g_ref, b_ref, w1_ref, b1_ref, w2_ref, b2_ref,
                o_ref, xn_ref, acc_ref):
    """Grid = (row tiles, hidden tiles). Hidden axis is the reduction axis."""
    h_idx = pl.program_id(1)
    n_h = pl.num_programs(1)

    # --- once per row tile: LayerNorm (f32), cache result in compute dtype ---
    @pl.when(h_idx == 0)
    def _():
        x = x_ref[...].astype(jnp.float32)
        mean = jnp.mean(x, axis=-1, keepdims=True)
        var = jnp.mean(jnp.square(x - mean), axis=-1, keepdims=True)
        xn = (x - mean) * lax.rsqrt(var + 1e-5)
        xn = xn * g_ref[...].astype(jnp.float32) + b_ref[...].astype(jnp.float32)
        xn_ref[...] = xn.astype(xn_ref.dtype)          # bf16 feed for the MXU
        acc_ref[...] = jnp.zeros_like(acc_ref)

    # --- Linear(dim -> th chunk), bf16 operands, f32 accumulation ---
    h1 = jnp.dot(xn_ref[...], w1_ref[...], preferred_element_type=jnp.float32)
    h1 = h1 + b1_ref[...].astype(jnp.float32)

    # --- GELU (exact, erf-based; matches PyTorch nn.GELU default) ---
    h1 = 0.5 * h1 * (1.0 + lax.erf(h1 * (1.0 / math.sqrt(2.0))))

    # --- Linear(th chunk -> dim), accumulate partial sums in f32 ---
    acc_ref[...] += jnp.dot(h1.astype(w2_ref.dtype), w2_ref[...],
                            preferred_element_type=jnp.float32)

    # --- once per row tile: add output bias and write back ---
    @pl.when(h_idx == n_h - 1)
    def _():
        out = acc_ref[...] + b2_ref[...].astype(jnp.float32)
        o_ref[...] = out.astype(o_ref.dtype)


def feedforward_pallas(x, gamma, beta, w1, b1, w2, b2, *,
                       tm=256, th=512, compute_dtype=jnp.bfloat16,
                       vmem_limit_bytes=48 * 1024 * 1024):
    """x: (..., dim). Returns the same shape/dtype as x.

    tm: row tile (multiple of 8; use 128 on v5e, 256-512 on v6e/v7x).
    th: hidden tile (multiple of 128 ideally; must divide hidden or it falls
        back to the full hidden dimension).
    """
    orig_shape = x.shape
    dim = orig_shape[-1]
    hidden = w1.shape[1]

    x2 = x.reshape(-1, dim)
    n = x2.shape[0]

    # Row tile: cover everything in one block for small inputs, otherwise use
    # tm (must be a multiple of 8). Ragged last block handled by Pallas.
    tm_eff = n if n <= tm else tm
    grid_m = pl.cdiv(n, tm_eff)

    # Hidden tile: th if it divides hidden, else a single full-hidden block.
    th_eff = th if hidden % th == 0 else hidden
    grid_h = hidden // th_eff

    # Cast weights to the MXU compute dtype once, outside the kernel.
    w1c = w1.astype(compute_dtype)
    w2c = w2.astype(compute_dtype)

    # Params as (1, D)/(1, H) rows for clean TPU layout.
    gamma2 = gamma.reshape(1, dim)
    beta2 = beta.reshape(1, dim)
    b1_2 = b1.reshape(1, hidden)
    b2_2 = b2.reshape(1, dim)

    out = pl.pallas_call(
        _ffn_kernel,
        out_shape=jax.ShapeDtypeStruct((n, dim), x.dtype),
        grid_spec=pltpu.PrefetchScalarGridSpec(
            num_scalar_prefetch=0,
            grid=(grid_m, grid_h),
            in_specs=[
                pl.BlockSpec((tm_eff, dim), lambda i, h: (i, 0)),    # x rows
                pl.BlockSpec((1, dim), lambda i, h: (0, 0)),         # gamma
                pl.BlockSpec((1, dim), lambda i, h: (0, 0)),         # beta
                pl.BlockSpec((dim, th_eff), lambda i, h: (0, h)),    # W1 chunk
                pl.BlockSpec((1, th_eff), lambda i, h: (0, h)),      # b1 chunk
                pl.BlockSpec((th_eff, dim), lambda i, h: (h, 0)),    # W2 chunk
                pl.BlockSpec((1, dim), lambda i, h: (0, 0)),         # b2
            ],
            out_specs=pl.BlockSpec((tm_eff, dim), lambda i, h: (i, 0)),
            scratch_shapes=[
                pltpu.VMEM((tm_eff, dim), compute_dtype),  # cached LN output
                pltpu.VMEM((tm_eff, dim), jnp.float32),    # f32 accumulator
            ],
        ),
        compiler_params=pltpu.CompilerParams(
            dimension_semantics=("parallel", "arbitrary"),
            vmem_limit_bytes=vmem_limit_bytes,
        ),
    )(x2, gamma2, beta2, w1c, b1_2, w2c, b2_2)

    return out.reshape(orig_shape)


def init_params(key, dim, hidden_dim, dtype=jnp.float32):
    """Deterministic synthetic parameters matching the PyTorch module shapes."""
    k1, k2, k3, k4 = jax.random.split(key, 4)
    # LayerNorm: weight=1, bias=0 (PyTorch default init).
    gamma = jnp.ones((dim,), dtype)
    beta = jnp.zeros((dim,), dtype)
    # Linear layers: uniform(-1/sqrt(fan_in), 1/sqrt(fan_in)), like PyTorch.
    lim1 = 1.0 / math.sqrt(dim)
    w1 = jax.random.uniform(k1, (dim, hidden_dim), dtype, -lim1, lim1)   # (in, out)
    b1 = jax.random.uniform(k2, (hidden_dim,), dtype, -lim1, lim1)
    lim2 = 1.0 / math.sqrt(hidden_dim)
    w2 = jax.random.uniform(k3, (hidden_dim, dim), dtype, -lim2, lim2)
    b2 = jax.random.uniform(k4, (dim,), dtype, -lim2, lim2)
    return gamma, beta, w1, b1, w2, b2


def feedforward_ref(x, gamma, beta, w1, b1, w2, b2, compute_dtype=jnp.bfloat16):
    """Pure-JAX reference with matching bf16-matmul / f32-accumulate semantics."""
    xf = x.astype(jnp.float32)
    mean = jnp.mean(xf, axis=-1, keepdims=True)
    var = jnp.mean(jnp.square(xf - mean), axis=-1, keepdims=True)
    xn = (xf - mean) * lax.rsqrt(var + 1e-5)
    xn = xn * gamma.astype(jnp.float32) + beta.astype(jnp.float32)
    h = jnp.dot(xn.astype(compute_dtype), w1.astype(compute_dtype),
                preferred_element_type=jnp.float32) + b1.astype(jnp.float32)
    h = 0.5 * h * (1.0 + lax.erf(h * (1.0 / math.sqrt(2.0))))
    out = jnp.dot(h.astype(compute_dtype), w2.astype(compute_dtype),
                  preferred_element_type=jnp.float32) + b2.astype(jnp.float32)
    return out.astype(x.dtype)


if __name__ == "__main__":
    key = jax.random.PRNGKey(0)
    kx, kp = jax.random.split(key)

    # Small but lane-dense shapes (dim, hidden multiples of 128).
    batch, seq, dim, hidden_dim = 2, 8, 128, 512
    x = jax.random.normal(kx, (batch, seq, dim), jnp.float32)

    gamma, beta, w1, b1, w2, b2 = init_params(kp, dim, hidden_dim)

    # th=256 exercises the hidden-tiled accumulator path (grid_h = 2).
    out = feedforward_pallas(x, gamma, beta, w1, b1, w2, b2, th=256)
    out = jax.block_until_ready(out)

    ref = feedforward_ref(x, gamma, beta, w1, b1, w2, b2)
    assert out.shape == x.shape and out.dtype == x.dtype
    assert jnp.allclose(out, ref, atol=1e-2, rtol=1e-2), "mismatch vs reference"

    print("KERNEL_OK")
</pallas_src>

<mosaic_0001>
module attributes {stable_mosaic.version = 11 : i64} {
  func.func @_ffn_kernel(%arg0: i32, %arg1: i32, %arg2: memref<16x128xf32, #tpu.memory_space<vmem>>, %arg3: memref<1x128xf32, #tpu.memory_space<vmem>>, %arg4: memref<1x128xf32, #tpu.memory_space<vmem>>, %arg5: memref<128x256xbf16, #tpu.memory_space<vmem>>, %arg6: memref<1x256xf32, #tpu.memory_space<vmem>>, %arg7: memref<256x128xbf16, #tpu.memory_space<vmem>>, %arg8: memref<1x128xf32, #tpu.memory_space<vmem>>, %arg9: memref<16x128xf32, #tpu.memory_space<vmem>>, %arg10: memref<16x128xbf16, #tpu.memory_space<vmem>>, %arg11: memref<16x128xf32, #tpu.memory_space<vmem>>) attributes {dimension_semantics = [#tpu.dimension_semantics<parallel>, #tpu.dimension_semantics<arbitrary>], iteration_bounds = array<i64: 1, 2>, scalar_prefetch = 0 : i64, scratch_operands = 2 : i64, tpu.core_type = #tpu.core_type<tc>, window_params = [{transform_indices = @transform_0, window_bounds = array<i64: 16, 128>}, {pipeline_mode = #tpu.pipeline_mode<synchronous>, transform_indices = @transform_1, window_bounds = array<i64: 1, 128>}, {pipeline_mode = #tpu.pipeline_mode<synchronous>, transform_indices = @transform_2, window_bounds = array<i64: 1, 128>}, {transform_indices = @transform_3, window_bounds = array<i64: 128, 256>}, {transform_indices = @transform_4, window_bounds = array<i64: 1, 256>}, {transform_indices = @transform_5, window_bounds = array<i64: 256, 128>}, {pipeline_mode = #tpu.pipeline_mode<synchronous>, transform_indices = @transform_6, window_bounds = array<i64: 1, 128>}, {transform_indices = @transform_7, window_bounds = array<i64: 16, 128>}]} {
    %c0_i32 = arith.constant 0 : i32
    %0 = arith.cmpi eq, %arg1, %c0_i32 : i32
    %1 = arith.extui %0 : i1 to i32
    %c0_i32_0 = arith.constant 0 : i32
    %2 = arith.cmpi ne, %1, %c0_i32_0 : i32
    scf.if %2 {
      %c0_17 = arith.constant 0 : index
      %c0_18 = arith.constant 0 : index
      %26 = vector.load %arg2[%c0_17, %c0_18] : memref<16x128xf32, #tpu.memory_space<vmem>>, vector<16x128xf32>
      %cst_19 = arith.constant dense<0.000000e+00> : vector<16xf32>
      %27 = vector.multi_reduction <add>, %26, %cst_19 [1] : vector<16x128xf32> to vector<16xf32>
      %28 = vector.shape_cast %27 : vector<16xf32> to vector<16x1xf32>
      %cst_20 = arith.constant 1.280000e+02 : f32
      %29 = vector.broadcast %cst_20 : f32 to vector<16x1xf32>
      %30 = arith.divf %28, %29 : vector<16x1xf32>
      %31 = vector.broadcast %30 : vector<16x1xf32> to vector<16x128xf32>
      %32 = arith.subf %26, %31 : vector<16x128xf32>
      %33 = arith.mulf %32, %32 : vector<16x128xf32>
      %cst_21 = arith.constant dense<0.000000e+00> : vector<16xf32>
      %34 = vector.multi_reduction <add>, %33, %cst_21 [1] : vector<16x128xf32> to vector<16xf32>
      %35 = vector.shape_cast %34 : vector<16xf32> to vector<16x1xf32>
      %cst_22 = arith.constant 1.280000e+02 : f32
      %36 = vector.broadcast %cst_22 : f32 to vector<16x1xf32>
      %37 = arith.divf %35, %36 : vector<16x1xf32>
      %38 = vector.broadcast %30 : vector<16x1xf32> to vector<16x128xf32>
      %39 = arith.subf %26, %38 : vector<16x128xf32>
      %cst_23 = arith.constant 9.99999974E-6 : f32
      %40 = vector.broadcast %cst_23 : f32 to vector<16x1xf32>
      %41 = arith.addf %37, %40 : vector<16x1xf32>
      %42 = math.rsqrt %41 : vector<16x1xf32>
      %43 = vector.broadcast %42 : vector<16x1xf32> to vector<16x128xf32>
      %44 = arith.mulf %39, %43 : vector<16x128xf32>
      %c0_24 = arith.constant 0 : index
      %c0_25 = arith.constant 0 : index
      %45 = vector.load %arg3[%c0_24, %c0_25] : memref<1x128xf32, #tpu.memory_space<vmem>>, vector<1x128xf32>
      %46 = vector.broadcast %45 : vector<1x128xf32> to vector<16x128xf32>
      %47 = arith.mulf %44, %46 : vector<16x128xf32>
      %c0_26 = arith.constant 0 : index
      %c0_27 = arith.constant 0 : index
      %48 = vector.load %arg4[%c0_26, %c0_27] : memref<1x128xf32, #tpu.memory_space<vmem>>, vector<1x128xf32>
      %49 = vector.broadcast %48 : vector<1x128xf32> to vector<16x128xf32>
      %50 = arith.addf %47, %49 : vector<16x128xf32>
      %51 = arith.truncf %50 : vector<16x128xf32> to vector<16x128xbf16>
      %c0_28 = arith.constant 0 : index
      %c0_29 = arith.constant 0 : index
      %52 = vector.load %arg10[%c0_28, %c0_29] : memref<16x128xbf16, #tpu.memory_space<vmem>>, vector<16x128xbf16>
      tpu.vector_store %arg10[%c0_28, %c0_29], %51 {strides = array<i32>} : memref<16x128xbf16, #tpu.memory_space<vmem>>, vector<16x128xbf16>,
      %cst_30 = arith.constant 0.000000e+00 : f32
      %53 = vector.broadcast %cst_30 : f32 to vector<16x128xf32>
      %c0_31 = arith.constant 0 : index
      %c0_32 = arith.constant 0 : index
      %54 = vector.load %arg11[%c0_31, %c0_32] : memref<16x128xf32, #tpu.memory_space<vmem>>, vector<16x128xf32>
      tpu.vector_store %arg11[%c0_31, %c0_32], %53 {strides = array<i32>} : memref<16x128xf32, #tpu.memory_space<vmem>>, vector<16x128xf32>,
    } else {
    }
    %c0 = arith.constant 0 : index
    %c0_1 = arith.constant 0 : index
    %3 = vector.load %arg10[%c0, %c0_1] : memref<16x128xbf16, #tpu.memory_space<vmem>>, vector<16x128xbf16>
    %c0_2 = arith.constant 0 : index
    %c0_3 = arith.constant 0 : index
    %4 = vector.load %arg5[%c0_2, %c0_3] : memref<128x256xbf16, #tpu.memory_space<vmem>>, vector<128x256xbf16>
    %cst = arith.constant dense<0.000000e+00> : vector<16x256xf32>
    %5 = tpu.matmul %3, %4, %cst {dimension_numbers = #tpu.dot_dimension_numbers<[1], [0], [0], [1], [0, 0, 1, 1], [], []>} : vector<16x128xbf16>, vector<128x256xbf16>, vector<16x256xf32> -> vector<16x256xf32>
    %c0_4 = arith.constant 0 : index
    %c0_5 = arith.constant 0 : index
    %6 = vector.load %arg6[%c0_4, %c0_5] : memref<1x256xf32, #tpu.memory_space<vmem>>, vector<1x256xf32>
    %7 = vector.broadcast %6 : vector<1x256xf32> to vector<16x256xf32>
    %8 = arith.addf %5, %7 : vector<16x256xf32>
    %cst_6 = arith.constant 5.000000e-01 : f32
    %9 = vector.broadcast %cst_6 : f32 to vector<16x256xf32>
    %10 = arith.mulf %9, %8 : vector<16x256xf32>
    %cst_7 = arith.constant 0.707106769 : f32
    %11 = vector.broadcast %cst_7 : f32 to vector<16x256xf32>
    %12 = arith.mulf %8, %11 : vector<16x256xf32>
    %13 = math.erf %12 : vector<16x256xf32>
    %cst_8 = arith.constant 1.000000e+00 : f32
    %14 = vector.broadcast %cst_8 : f32 to vector<16x256xf32>
    %15 = arith.addf %14, %13 : vector<16x256xf32>
    %16 = arith.mulf %10, %15 : vector<16x256xf32>
    %c0_9 = arith.constant 0 : index
    %c0_10 = arith.constant 0 : index
    %17 = vector.load %arg11[%c0_9, %c0_10] : memref<16x128xf32, #tpu.memory_space<vmem>>, vector<16x128xf32>
    %18 = arith.truncf %16 : vector<16x256xf32> to vector<16x256xbf16>
    %c0_11 = arith.constant 0 : index
    %c0_12 = arith.constant 0 : index
    %19 = vector.load %arg7[%c0_11, %c0_12] : memref<256x128xbf16, #tpu.memory_space<vmem>>, vector<256x128xbf16>
    %cst_13 = arith.constant dense<0.000000e+00> : vector<16x128xf32>
    %20 = tpu.matmul %18, %19, %cst_13 {dimension_numbers = #tpu.dot_dimension_numbers<[1], [0], [0], [1], [0, 0, 1, 1], [], []>} : vector<16x256xbf16>, vector<256x128xbf16>, vector<16x128xf32> -> vector<16x128xf32>
    %21 = arith.addf %17, %20 : vector<16x128xf32>
    %c0_14 = arith.constant 0 : index
    %c0_15 = arith.constant 0 : index
    %22 = vector.load %arg11[%c0_14, %c0_15] : memref<16x128xf32, #tpu.memory_space<vmem>>, vector<16x128xf32>
    tpu.vector_store %arg11[%c0_14, %c0_15], %21 {strides = array<i32>} : memref<16x128xf32, #tpu.memory_space<vmem>>, vector<16x128xf32>,
    %c1_i32 = arith.constant 1 : i32
    %23 = arith.cmpi eq, %arg1, %c1_i32 : i32
    %24 = arith.extui %23 : i1 to i32
    %c0_i32_16 = arith.constant 0 : i32
    %25 = arith.cmpi ne, %24, %c0_i32_16 : i32
    scf.if %25 {
      %c0_17 = arith.constant 0 : index
      %c0_18 = arith.constant 0 : index
      %26 = vector.load %arg11[%c0_17, %c0_18] : memref<16x128xf32, #tpu.memory_space<vmem>>, vector<16x128xf32>
      %c0_19 = arith.constant 0 : index
      %c0_20 = arith.constant 0 : index
      %27 = vector.load %arg8[%c0_19, %c0_20] : memref<1x128xf32, #tpu.memory_space<vmem>>, vector<1x128xf32>
      %28 = vector.broadcast %27 : vector<1x128xf32> to vector<16x128xf32>
      %29 = arith.addf %26, %28 : vector<16x128xf32>
      %c0_21 = arith.constant 0 : index
      %c0_22 = arith.constant 0 : index
      %30 = vector.load %arg9[%c0_21, %c0_22] : memref<16x128xf32, #tpu.memory_space<vmem>>, vector<16x128xf32>
      tpu.vector_store %arg9[%c0_21, %c0_22], %29 {strides = array<i32>} : memref<16x128xf32, #tpu.memory_space<vmem>>, vector<16x128xf32>,
    } else {
    }
    return
  }
  func.func @transform_0(%arg0: i32, %arg1: i32) -> (i32, i32) {
    %c0_i32 = arith.constant 0 : i32
    %c0_i32_0 = arith.constant 0 : i32
    return %arg0, %c0_i32 : i32, i32
  }
  func.func @transform_1(%arg0: i32, %arg1: i32) -> (i32, i32) {
    %c0_i32 = arith.constant 0 : i32
    %c0_i32_0 = arith.constant 0 : i32
    %c0_i32_1 = arith.constant 0 : i32
    return %c0_i32, %c0_i32_0 : i32, i32
  }
  func.func @transform_2(%arg0: i32, %arg1: i32) -> (i32, i32) {
    %c0_i32 = arith.constant 0 : i32
    %c0_i32_0 = arith.constant 0 : i32
    %c0_i32_1 = arith.constant 0 : i32
    return %c0_i32, %c0_i32_0 : i32, i32
  }
  func.func @transform_3(%arg0: i32, %arg1: i32) -> (i32, i32) {
    %c0_i32 = arith.constant 0 : i32
    %c0_i32_0 = arith.constant 0 : i32
    return %c0_i32, %arg1 : i32, i32
  }
  func.func @transform_4(%arg0: i32, %arg1: i32) -> (i32, i32) {
    %c0_i32 = arith.constant 0 : i32
    %c0_i32_0 = arith.constant 0 : i32
    return %c0_i32, %arg1 : i32, i32
  }
  func.func @transform_5(%arg0: i32, %arg1: i32) -> (i32, i32) {
    %c0_i32 = arith.constant 0 : i32
    %c0_i32_0 = arith.constant 0 : i32
    return %arg1, %c0_i32 : i32, i32
  }
  func.func @transform_6(%arg0: i32, %arg1: i32) -> (i32, i32) {
    %c0_i32 = arith.constant 0 : i32
    %c0_i32_0 = arith.constant 0 : i32
    %c0_i32_1 = arith.constant 0 : i32
    return %c0_i32, %c0_i32_0 : i32, i32
  }
  func.func @transform_7(%arg0: i32, %arg1: i32) -> (i32, i32) {
    %c0_i32 = arith.constant 0 : i32
    %c0_i32_0 = arith.constant 0 : i32
    return %arg0, %c0_i32 : i32, i32
  }
}

</mosaic_0001>

<llo_original>
// kernel: tpu_custom_call.1
$region0: #{tpu_custom_call.1}
  #allocation0 [shape = 'u32[]', space=smem, size = 0x4, offset = 0x4, fixed_abs, tag = 'smem constant byte address 0x4 - core index']
  #allocation1 [shape = 'u32[72,128]{1,0:T(1,128)}', space=vmem, size = 0x9000, scoped, tag = 'internal scratch']
  #allocation2 [shape = 'bf16[16,128]{1,0:T(8,128)(2,1)}', space=vmem, size = 0x1000, scoped, tag = 'scratch operand']
  #allocation3 [shape = 'f32[16,128]{1,0:T(8,128)}', space=vmem, size = 0x2000, scoped, tag = 'scratch operand']
  %s0 = inlined_call_operand.hbm [shape: f32[16,128], index: 0, kind: input, shape index: {}]
  %s1 = inlined_call_operand.hbm [shape: f32[1,128], index: 1, kind: input, shape index: {}]
  %s2 = inlined_call_operand.vmem [shape: f32[1,128], index: 2, kind: input, shape index: {}]
  %s3 = inlined_call_operand.hbm [shape: bf16[128,512], index: 3, kind: input, shape index: {}]
  %s4 = inlined_call_operand.hbm [shape: f32[1,512], index: 4, kind: input, shape index: {}]
  %s5 = inlined_call_operand.hbm [shape: bf16[512,128], index: 5, kind: input, shape index: {}]
  %s6 = inlined_call_operand.vmem [shape: f32[1,128], index: 6, kind: input, shape index: {}]
  %s7 = inlined_call_operand.hbm [shape: f32[16,128], index: 7, kind: output, shape index: {}]
  %s8 = sld [smem:[#allocation0]]
  $region89: #{tpu_custom_call.1} parent=0
    _
  %s10 = ssub.s32 1, %s8
  %s11 = scalar_select 0, %s10, %s8
  $region1: #{tpu_custom_call.1} parent=0
    #allocation4 [shape = 'u8[8192]{0}', space=vmem, size = 0x2000, scoped, tag = 'input window, operand 0, single buffered']
    #allocation5 [shape = 's32[2]{0}', space=sflag, size = 0x8, scoped, tag = 'scoped memory for tpu_custom_call.1']
    #allocation6 [shape = 's32[2]{0}', space=sflag, size = 0x8, scoped, tag = 'scoped memory for tpu_custom_call.1']
    #allocation7 [shape = 'u8[512]{0}', space=vmem, size = 0x400, scoped, tag = 'input window, operand 1, single buffered']
    #allocation8 [shape = 's32[1]{0}', space=sflag, size = 0x4, scoped, tag = 'scoped memory for tpu_custom_call.1']
    #allocation9 [shape = 'u8[131072]{0}', space=vmem, size = 0x20000, scoped, tag = 'input window, operand 3']
    #allocation10 [shape = 'u8[2048]{0}', space=vmem, size = 0x800, scoped, tag = 'input window, operand 4']
    #allocation11 [shape = 'u8[131072]{0}', space=vmem, size = 0x20000, scoped, tag = 'input window, operand 5']
    #allocation12 [shape = 'u8[8192]{0}', space=vmem, size = 0x2000, scoped, tag = 'output window, operand 0, single buffered']
    %12 = vsyncpa [#allocation5], 0
    %13 = vsyncpa [#allocation8], 0
    %14 = vsyncpa [#allocation6], 0
    loop: start=0, step=1, limit=4
    $region2: #{tpu_custom_call.1} parent=1 // loop_pre_header
      _
    $region3: #{tpu_custom_call.1} parent=1 // loop_header
      %s16 = sphi 0, %s20
      %p17 = scmp.ge.s32.totalorder %s16, 4
      %s23 = sphi 0, %s35
      %s24 = sphi 0, %s31
      %s25 = sphi 0, %s23
      %s26 = sphi 0, %s24
      %s27 = sphi 0, %s25
      %s28 = sphi 0, %s26
      %s38 = sphi 0, %s40
      %s41 = sphi 0, %s38
      %s42 = sphi 0, %s41
      %s58 = sphi 0, %s42
      %s62 = sphi 0, %s62
      %s64 = sphi 0, %s62
      %s65 = sphi 0, %s64
      %s79 = sphi 0, %s65
      %s83 = sphi 0, %s83
      %s85 = sphi 0, %s83
      %s86 = sphi 0, %s85
      %s100 = sphi 0, %s86
      %s106 = sphi 0, %s108
      %s109 = sphi 0, %s106
      %s110 = sphi 0, %s109
      %s126 = sphi 0, %s110
      %s132 = sphi 0, %s134
      %s135 = sphi 0, %s132
      %s136 = sphi 0, %s135
      %s152 = sphi 0, %s136
      %s158 = sphi 0, %s160
      %s161 = sphi 0, %s158
      %s162 = sphi 0, %s161
      %s178 = sphi 0, %s162
      %s182 = sphi 0, %s182
      %s184 = sphi 0, %s182
      %s185 = sphi 0, %s184
      %s199 = sphi 0, %s185
      %s205 = sphi 0, %s207
      %s208 = sphi 0, %s205
      %s209 = sphi 0, %s208
      %s225 = sphi 0, %s209
    $region4: #{tpu_custom_call.1} parent=1 // loop_header_branch
      %19 = sbr.rel (%p17) target = $region8
    $region5: #{tpu_custom_call.1} parent=1 // loop_body
      %s21 = ssub.s32 %s16, 1
      %s22 = ssub.s32 %s16, 2
      %s29 = sadd.s32 1, %s24
      %p30 = scmp.ge.s32.totalorder %s29, 2
      %s31 = scalar_select %p30, 0, %s29
      %s32 = sadd.s32 1, %s23
      %s33 = scalar_select %p30, %s32, %s23
      %p34 = scmp.ge.s32.totalorder %s33, 1
      %s35 = scalar_select %p34, 0, %s33
      %s36 = ssub.s32 %s23, %s35
      %p37 = scmp.eq.s32.totalorder %s36, 0
      %s39 = sadd.s32 %s38, 1
      %s40 = scalar_select %p37, %s38, %s39
      %p43 = pneg %p37
      %p44 = scmp.eq.s32.totalorder %s16, 1
      %p45 = por %p43, %p44
      %p46 = scmp.ne.s32.totalorder %s38, %s41
      %p47 = scmp.eq.s32.totalorder %s16, 0
      %p48 = por %p46, %p47
      %p49 = scmp.ne.s32.totalorder %s38, %s41
      %p50 = scmp.eq.s32.totalorder %s21, 1
      %p51 = por %p49, %p50
      %p52 = scmp.ne.s32.totalorder %s41, %s42
      %p53 = scmp.eq.s32.totalorder %s21, 0
      %p54 = por %p52, %p53
      %p55 = scmp.ne.s32.totalorder %s41, %s42
      %p56 = scmp.eq.s32.totalorder %s22, 1
      %p57 = por %p55, %p56
      %p59 = scmp.ne.s32.totalorder %s42, %s58
      %p60 = scmp.eq.s32.totalorder %s22, 0
      %p61 = por %p59, %p60
      %s63 = sadd.s32 %s62, 1
      %p66 = scmp.eq.s32.totalorder %s16, 1
      %p67 = scmp.ne.s32.totalorder %s62, %s64
      %p68 = scmp.eq.s32.totalorder %s16, 0
      %p69 = por %p67, %p68
      %p70 = scmp.ne.s32.totalorder %s62, %s64
      %p71 = scmp.eq.s32.totalorder %s21, 1
      %p72 = por %p70, %p71
      %p73 = scmp.ne.s32.totalorder %s64, %s65
      %p74 = scmp.eq.s32.totalorder %s21, 0
      %p75 = por %p73, %p74
      %p76 = scmp.ne.s32.totalorder %s64, %s65
      %p77 = scmp.eq.s32.totalorder %s22, 1
      %p78 = por %p76, %p77
      %p80 = scmp.ne.s32.totalorder %s65, %s79
      %p81 = scmp.eq.s32.totalorder %s22, 0
      %p82 = por %p80, %p81
      %s84 = sadd.s32 %s83, 1
      %p87 = scmp.eq.s32.totalorder %s16, 1
      %p88 = scmp.ne.s32.totalorder %s83, %s85
      %p89 = scmp.eq.s32.totalorder %s16, 0
      %p90 = por %p88, %p89
      %p91 = scmp.ne.s32.totalorder %s83, %s85
      %p92 = scmp.eq.s32.totalorder %s21, 1
      %p93 = por %p91, %p92
      %p94 = scmp.ne.s32.totalorder %s85, %s86
      %p95 = scmp.eq.s32.totalorder %s21, 0
      %p96 = por %p94, %p95
      %p97 = scmp.ne.s32.totalorder %s85, %s86
      %p98 = scmp.eq.s32.totalorder %s22, 1
      %p99 = por %p97, %p98
      %p101 = scmp.ne.s32.totalorder %s86, %s100
      %p102 = scmp.eq.s32.totalorder %s22, 0
      %p103 = por %p101, %p102
      %s104 = ssub.s32 %s24, %s31
      %p105 = scmp.eq.s32.totalorder %s104, 0
      %s107 = sadd.s32 %s106, 1
      %s108 = scalar_select %p105, %s106, %s107
      %p111 = pneg %p105
      %p112 = scmp.eq.s32.totalorder %s16, 1
      %p113 = por %p111, %p112
      %p114 = scmp.ne.s32.totalorder %s106, %s109
      %p115 = scmp.eq.s32.totalorder %s16, 0
      %p116 = por %p114, %p115
      %p117 = scmp.ne.s32.totalorder %s106, %s109
      %p118 = scmp.eq.s32.totalorder %s21, 1
      %p119 = por %p117, %p118
      %p120 = scmp.ne.s32.totalorder %s109, %s110
      %p121 = scmp.eq.s32.totalorder %s21, 0
      %p122 = por %p120, %p121
      %p123 = scmp.ne.s32.totalorder %s109, %s110
      %p124 = scmp.eq.s32.totalorder %s22, 1
      %p125 = por %p123, %p124
      %p127 = scmp.ne.s32.totalorder %s110, %s126
      %p128 = scmp.eq.s32.totalorder %s22, 0
      %p129 = por %p127, %p128
      %s130 = ssub.s32 %s24, %s31
      %p131 = scmp.eq.s32.totalorder %s130, 0
      %s133 = sadd.s32 %s132, 1
      %s134 = scalar_select %p131, %s132, %s133
      %p137 = pneg %p131
      %p138 = scmp.eq.s32.totalorder %s16, 1
      %p139 = por %p137, %p138
      %p140 = scmp.ne.s32.totalorder %s132, %s135
      %p141 = scmp.eq.s32.totalorder %s16, 0
      %p142 = por %p140, %p141
      %p143 = scmp.ne.s32.totalorder %s132, %s135
      %p144 = scmp.eq.s32.totalorder %s21, 1
      %p145 = por %p143, %p144
      %p146 = scmp.ne.s32.totalorder %s135, %s136
      %p147 = scmp.eq.s32.totalorder %s21, 0
      %p148 = por %p146, %p147
      %p149 = scmp.ne.s32.totalorder %s135, %s136
      %p150 = scmp.eq.s32.totalorder %s22, 1
      %p151 = por %p149, %p150
      %p153 = scmp.ne.s32.totalorder %s136, %s152
      %p154 = scmp.eq.s32.totalorder %s22, 0
      %p155 = por %p153, %p154
      %s156 = ssub.s32 %s24, %s31
      %p157 = scmp.eq.s32.totalorder %s156, 0
      %s159 = sadd.s32 %s158, 1
      %s160 = scalar_select %p157, %s158, %s159
      %p163 = pneg %p157
      %p164 = scmp.eq.s32.totalorder %s16, 1
      %p165 = por %p163, %p164
      %p166 = scmp.ne.s32.totalorder %s158, %s161
      %p167 = scmp.eq.s32.totalorder %s16, 0
      %p168 = por %p166, %p167
      %p169 = scmp.ne.s32.totalorder %s158, %s161
      %p170 = scmp.eq.s32.totalorder %s21, 1
      %p171 = por %p169, %p170
      %p172 = scmp.ne.s32.totalorder %s161, %s162
      %p173 = scmp.eq.s32.totalorder %s21, 0
      %p174 = por %p172, %p173
      %p175 = scmp.ne.s32.totalorder %s161, %s162
      %p176 = scmp.eq.s32.totalorder %s22, 1
      %p177 = por %p175, %p176
      %p179 = scmp.ne.s32.totalorder %s162, %s178
      %p180 = scmp.eq.s32.totalorder %s22, 0
      %p181 = por %p179, %p180
      %s183 = sadd.s32 %s182, 1
      %p186 = scmp.eq.s32.totalorder %s16, 1
      %p187 = scmp.ne.s32.totalorder %s182, %s184
      %p188 = scmp.eq.s32.totalorder %s16, 0
      %p189 = por %p187, %p188
      %p190 = scmp.ne.s32.totalorder %s182, %s184
      %p191 = scmp.eq.s32.totalorder %s21, 1
      %p192 = por %p190, %p191
      %p193 = scmp.ne.s32.totalorder %s184, %s185
      %p194 = scmp.eq.s32.totalorder %s21, 0
      %p195 = por %p193, %p194
      %p196 = scmp.ne.s32.totalorder %s184, %s185
      %p197 = scmp.eq.s32.totalorder %s22, 1
      %p198 = por %p196, %p197
      %p200 = scmp.ne.s32.totalorder %s185, %s199
      %p201 = scmp.eq.s32.totalorder %s22, 0
      %p202 = por %p200, %p201
      %s203 = ssub.s32 %s23, %s35
      %p204 = scmp.eq.s32.totalorder %s203, 0
      %s206 = sadd.s32 %s205, 1
      %s207 = scalar_select %p204, %s205, %s206
      %p210 = pneg %p204
      %p211 = scmp.eq.s32.totalorder %s16, 1
      %p212 = por %p210, %p211
      %p213 = scmp.ne.s32.totalorder %s205, %s208
      %p214 = scmp.eq.s32.totalorder %s16, 0
      %p215 = por %p213, %p214
      %p216 = scmp.ne.s32.totalorder %s205, %s208
      %p217 = scmp.eq.s32.totalorder %s21, 1
      %p218 = por %p216, %p217
      %p219 = scmp.ne.s32.totalorder %s208, %s209
      %p220 = scmp.eq.s32.totalorder %s21, 0
      %p221 = por %p219, %p220
      %p222 = scmp.ne.s32.totalorder %s208, %s209
      %p223 = scmp.eq.s32.totalorder %s22, 1
      %p224 = por %p222, %p223
      %p226 = scmp.ne.s32.totalorder %s209, %s225
      %p227 = scmp.eq.s32.totalorder %s22, 0
      %p228 = por %p226, %p227
      %p229 = scmp.le.s32.totalorder 1, %s16
      %p230 = scmp.lt.s32.totalorder %s16, 3
      %p231 = pnand %p229, %p230
      %p232 = pneg %p231
      // Predicated region
      $region9: #{tpu_custom_call.1} parent=5 // pred_check
        _
      $region10: #{tpu_custom_call.1} parent=5 // pred_check_branch
        %234 = sbr.rel (%p231) target = $region12
      $region11: #{tpu_custom_call.1} parent=5 // pred_region
        %s235 = ssub.s32 %s16, 1
        // Predicated region
        $region13: #{tpu_custom_call.1} parent=11 // pred_check
          %p236 = pneg %p54
        $region14: #{tpu_custom_call.1} parent=11 // pred_check_branch
          %238 = sbr.rel (%p236) target = $region16
        $region15: #{tpu_custom_call.1} parent=11 // pred_region
          %s239 = smul.u32 2, %s25
          %241 = vsyncadd [#allocation5], 0
          %s242 = smul.addr %s239, 8
          %s243 = scalar_lea.hbm %s0, %s242
          %s244 = sshll.u32 %s243, 4
          %s245 = int_to_ptr.hbm [resolvable:$true] %s244
          %s246 = sshll.u32 [#allocation4], 4
          %s247 = int_to_ptr.vmem [resolvable:$true] %s246
          %252 = dma.hbm_to_vmem [thread:$0]  %s245, 256, %s247, [#allocation5], 128, 128, 8
        $region16: #{tpu_custom_call.1} parent=11 // pred_fallthru
          _
        // Predicated region
        $region17: #{tpu_custom_call.1} parent=11 // pred_check
          %p253 = pneg %p75
        $region18: #{tpu_custom_call.1} parent=11 // pred_check_branch
          %255 = sbr.rel (%p253) target = $region20
        $region19: #{tpu_custom_call.1} parent=11 // pred_region
          %257 = vsyncadd [#allocation8], 0
          %s259 = sshll.u32 %s1, 4
          %s260 = int_to_ptr.hbm [resolvable:$true] %s259
          %s261 = sshll.u32 [#allocation7], 4
          %s262 = int_to_ptr.vmem [resolvable:$true] %s261
          %264 = dma.hbm_to_vmem [thread:$0]  %s260, 16, %s262, [#allocation8]
        $region20: #{tpu_custom_call.1} parent=11 // pred_fallthru
          _
        // Predicated region
        $region21: #{tpu_custom_call.1} parent=11 // pred_check
          %p265 = pneg %p96
        $region22: #{tpu_custom_call.1} parent=11 // pred_check_branch
          %267 = sbr.rel (%p265) target = $region24
        $region23: #{tpu_custom_call.1} parent=11 // pred_region
          _
        $region24: #{tpu_custom_call.1} parent=11 // pred_fallthru
          _
        // Predicated region
        $region25: #{tpu_custom_call.1} parent=11 // pred_check
          %p268 = pneg %p195
        $region26: #{tpu_custom_call.1} parent=11 // pred_check_branch
          %270 = sbr.rel (%p268) target = $region28
        $region27: #{tpu_custom_call.1} parent=11 // pred_region
          _
        $region28: #{tpu_custom_call.1} parent=11 // pred_fallthru
          _
      $region12: #{tpu_custom_call.1} parent=5 // pred_fallthru
        _
      %p271 = scmp.lt.s32.totalorder %s16, 2
      // Predicated region
      $region29: #{tpu_custom_call.1} parent=5 // pred_check
        %p272 = pneg %p271
      $region30: #{tpu_custom_call.1} parent=5 // pred_check_branch
        %274 = sbr.rel (%p272) target = $region32
      $region31: #{tpu_custom_call.1} parent=5 // pred_region
        // Predicated region
        $region33: #{tpu_custom_call.1} parent=31 // pred_check
          %p275 = pneg %p116
        $region34: #{tpu_custom_call.1} parent=31 // pred_check_branch
          %277 = sbr.rel (%p275) target = $region36
        $region35: #{tpu_custom_call.1} parent=31 // pred_region
          %s278 = sand.u32 %s16, 1
          %s279 = scalar_lea.sflag [#allocation5], %s278
          %s280 = sand.u32 %s106, 1
          %s281 = smul.addr %s280, 128
          %s282 = scalar_lea.vmem [#allocation9], %s281
          %s283 = smul.u32 2, %s24
          %285 = vsyncadd %s279, 0
          %s286 = smul.addr %s283, 4
          %s287 = scalar_lea.hbm %s3, %s286
          %s288 = sshll.u32 %s287, 4
          %s289 = int_to_ptr.hbm [resolvable:$true] %s288
          %s290 = sshll.u32 %s282, 4
          %s291 = int_to_ptr.vmem [resolvable:$true] %s290
          %296 = dma.hbm_to_vmem [thread:$0]  %s289, 2048, %s291, %s279, 256, 128, 8
        $region36: #{tpu_custom_call.1} parent=31 // pred_fallthru
          _
        // Predicated region
        $region37: #{tpu_custom_call.1} parent=31 // pred_check
          %p297 = pneg %p142
        $region38: #{tpu_custom_call.1} parent=31 // pred_check_branch
          %299 = sbr.rel (%p297) target = $region40
        $region39: #{tpu_custom_call.1} parent=31 // pred_region
          %s300 = sand.u32 %s16, 1
          %s301 = scalar_lea.sflag [#allocation5], %s300
          %s302 = sand.u32 %s132, 1
          %s303 = smul.addr %s302, 2
          %s304 = scalar_lea.vmem [#allocation10], %s303
          %s305 = smul.u32 2, %s24
          %307 = vsyncadd %s301, 0
          %s308 = scalar_lea.hbm %s4, %s305
          %s310 = sshll.u32 %s308, 4
          %s311 = int_to_ptr.hbm [resolvable:$true] %s310
          %s312 = sshll.u32 %s304, 4
          %s313 = int_to_ptr.vmem [resolvable:$true] %s312
          %315 = dma.hbm_to_vmem [thread:$0]  %s311, 32, %s313, %s301
        $region40: #{tpu_custom_call.1} parent=31 // pred_fallthru
          _
        // Predicated region
        $region41: #{tpu_custom_call.1} parent=31 // pred_check
          %p316 = pneg %p168
        $region42: #{tpu_custom_call.1} parent=31 // pred_check_branch
          %318 = sbr.rel (%p316) target = $region44
        $region43: #{tpu_custom_call.1} parent=31 // pred_region
          %s319 = sand.u32 %s16, 1
          %s320 = scalar_lea.sflag [#allocation5], %s319
          %s321 = sand.u32 %s158, 1
          %s322 = smul.addr %s321, 128
          %s323 = scalar_lea.vmem [#allocation11], %s322
          %s324 = smul.u32 32, %s24
          %326 = vsyncadd %s320, 0
          %s327 = smul.addr %s324, 4
          %s328 = scalar_lea.hbm %s5, %s327
          %s329 = sshll.u32 %s328, 4
          %s330 = int_to_ptr.hbm [resolvable:$true] %s329
          %s331 = sshll.u32 %s323, 4
          %s332 = int_to_ptr.vmem [resolvable:$true] %s331
          %337 = dma.hbm_to_vmem [thread:$0]  %s330, 2048, %s332, %s320, 64, 64, 4
        $region44: #{tpu_custom_call.1} parent=31 // pred_fallthru
          _
      $region32: #{tpu_custom_call.1} parent=5 // pred_fallthru
        _
      %p338 = scmp.le.s32.totalorder 1, %s16
      %p339 = scmp.lt.s32.totalorder %s16, 3
      %p340 = pnand %p338, %p339
      %p341 = pneg %p340
      // Predicated region
      $region45: #{tpu_custom_call.1} parent=5 // pred_check
        _
      $region46: #{tpu_custom_call.1} parent=5 // pred_check_branch
        %343 = sbr.rel (%p340) target = $region48
      $region47: #{tpu_custom_call.1} parent=5 // pred_region
        %s344 = ssub.s32 %s16, 1
        // Predicated region
        $region49: #{tpu_custom_call.1} parent=47 // pred_check
          %p345 = pneg %p54
        $region50: #{tpu_custom_call.1} parent=47 // pred_check_branch
          %347 = sbr.rel (%p345) target = $region52
        $region51: #{tpu_custom_call.1} parent=47 // pred_region
          %349 = dma.done [#allocation5], 256
        $region52: #{tpu_custom_call.1} parent=47 // pred_fallthru
          _
        // Predicated region
        $region53: #{tpu_custom_call.1} parent=47 // pred_check
          %p350 = pneg %p75
        $region54: #{tpu_custom_call.1} parent=47 // pred_check_branch
          %352 = sbr.rel (%p350) target = $region56
        $region55: #{tpu_custom_call.1} parent=47 // pred_region
          %354 = dma.done [#allocation8], 16
        $region56: #{tpu_custom_call.1} parent=47 // pred_fallthru
          _
        %s355 = sand.u32 %s21, 1
        %s356 = scalar_lea.sflag [#allocation5], %s355
        %s357 = sand.u32 %s109, 1
        %s358 = smul.addr %s357, 128
        %s359 = scalar_lea.vmem [#allocation9], %s358
        // Predicated region
        $region57: #{tpu_custom_call.1} parent=47 // pred_check
          %p360 = pneg %p122
        $region58: #{tpu_custom_call.1} parent=47 // pred_check_branch
          %362 = sbr.rel (%p360) target = $region60
        $region59: #{tpu_custom_call.1} parent=47 // pred_region
          %364 = dma.done %s356, 2048
        $region60: #{tpu_custom_call.1} parent=47 // pred_fallthru
          _
        %s365 = sand.u32 %s21, 1
        %s366 = scalar_lea.sflag [#allocation5], %s365
        %s367 = sand.u32 %s135, 1
        %s368 = smul.addr %s367, 2
        %s369 = scalar_lea.vmem [#allocation10], %s368
        // Predicated region
        $region61: #{tpu_custom_call.1} parent=47 // pred_check
          %p370 = pneg %p148
        $region62: #{tpu_custom_call.1} parent=47 // pred_check_branch
          %372 = sbr.rel (%p370) target = $region64
        $region63: #{tpu_custom_call.1} parent=47 // pred_region
          %374 = dma.done %s366, 32
        $region64: #{tpu_custom_call.1} parent=47 // pred_fallthru
          _
        %s375 = sand.u32 %s21, 1
        %s376 = scalar_lea.sflag [#allocation5], %s375
        %s377 = sand.u32 %s161, 1
        %s378 = smul.addr %s377, 128
        %s379 = scalar_lea.vmem [#allocation11], %s378
        // Predicated region
        $region65: #{tpu_custom_call.1} parent=47 // pred_check
          %p380 = pneg %p174
        $region66: #{tpu_custom_call.1} parent=47 // pred_check_branch
          %382 = sbr.rel (%p380) target = $region68
        $region67: #{tpu_custom_call.1} parent=47 // pred_region
          %384 = dma.done %s376, 2048
        $region68: #{tpu_custom_call.1} parent=47 // pred_fallthru
          _
        %p385 = pneg %p54
        %p386 = pneg %p51
        %p387 = pneg %p75
        %p388 = pneg %p72
        %p389 = pneg %p96
        %p390 = pneg %p93
        %s391 = sand.u32 %s21, 1
        %s392 = scalar_lea.sflag [#allocation5], %s391
        %s393 = sand.u32 %s109, 1
        %s394 = smul.addr %s393, 128
        %s395 = scalar_lea.vmem [#allocation9], %s394
        %p396 = pneg %p122
        %p397 = pneg %p119
        %s398 = sand.u32 %s21, 1
        %s399 = scalar_lea.sflag [#allocation5], %s398
        %s400 = sand.u32 %s135, 1
        %s401 = smul.addr %s400, 2
        %s402 = scalar_lea.vmem [#allocation10], %s401
        %p403 = pneg %p148
        %p404 = pneg %p145
        %s405 = sand.u32 %s21, 1
        %s406 = scalar_lea.sflag [#allocation5], %s405
        %s407 = sand.u32 %s161, 1
        %s408 = smul.addr %s407, 128
        %s409 = scalar_lea.vmem [#allocation11], %s408
        %p410 = pneg %p174
        %p411 = pneg %p171
        %p412 = pneg %p195
        %p413 = pneg %p192
        %p414 = pneg %p221
        %p415 = pneg %p218
        %s416 = smul.u32 2, %s25
        %s417 = smul.u32 2, %s26
        %s418 = smul.u32 2, %s26
        %s419 = smul.u32 32, %s26
        %s420 = smul.u32 2, %s25
        %p421 = scmp.eq.s32.totalorder %s26, 0
        // Predicated region
        $region69: #{tpu_custom_call.1} parent=47 // pred_check
          %p422 = pneg %p421
        $region70: #{tpu_custom_call.1} parent=47 // pred_check_branch
          %424 = sbr.rel (%p422) target = $region72
        $region71: #{tpu_custom_call.1} parent=47 // pred_region
          %v425 = vld [vmem:[#allocation4] sm:$0xff]
          %v426 = vld [vmem:[#allocation4 + $0x8] sm:$0xff]
          %427 = vadd.xlane.f32.xlu0 %v425
          %v428 = vpop.xlane.xlu0 %427
          %429 = vadd.xlane.f32.xlu0 %v426
          %v430 = vpop.xlane.xlu0 %429
          %v431 = vrcp.pop 128.0
          %v432 = vmul.f32 128.0, %v431
          %v433 = vsub.f32 1.0, %v432
          %v434 = vmul.f32 %v431, %v433
          %v435 = vadd.f32 %v431, %v434
          %vm436 = vweird.f32 %v431
          %v437 = vsel %vm436, %v431, %v435
          %v438 = vmul.f32 %v428, %v437
          %v439 = vmul.f32 %v430, %v437
          %v440 = vsub.f32 %v425, %v438
          %v441 = vsub.f32 %v426, %v439
          %v442 = vmul.f32 %v440, %v440
          %v443 = vmul.f32 %v441, %v441
          %444 = vadd.xlane.f32.xlu0 %v442
          %v445 = vpop.xlane.xlu0 %444
          %446 = vadd.xlane.f32.xlu0 %v443
          %v447 = vpop.xlane.xlu0 %446
          %v448 = vmul.f32 %v445, %v437
          %v449 = vmul.f32 %v447, %v437
          %v450 = vadd.f32 %v448, 1e-05
          %v451 = vadd.f32 %v449, 1e-05
          %v452 = vrsqrt.pop %v450
          %v453 = vmul.f32 %v452, %v450
          %v454 = vmul.f32 %v453, %v452
          %v455 = vmul.f32 0.5, %v454
          %v456 = vsub.f32 1.5, %v455
          %v457 = vmul.f32 %v452, %v456
          %vm458 = vweird.f32 %v450
          %vm459 = vweird.f32 %v452
          %vm460 = vmor %vm458, %vm459
          %v461 = vsel %vm460, %v452, %v457
          %v462 = vrsqrt.pop %v451
          %v463 = vmul.f32 %v462, %v451
          %v464 = vmul.f32 %v463, %v462
          %v465 = vmul.f32 0.5, %v464
          %v466 = vsub.f32 1.5, %v465
          %v467 = vmul.f32 %v462, %v466
          %vm468 = vweird.f32 %v451
          %vm469 = vweird.f32 %v462
          %vm470 = vmor %vm468, %vm469
          %v471 = vsel %vm470, %v462, %v467
          %v472 = vmul.f32 %v440, %v461
          %v473 = vmul.f32 %v441, %v471
          %v474 = vld [vmem:[#allocation7] sm:$0x1]
          %v476 = vperm.slane %v474, 0
          %v478 = vmul.f32 %v472, %v476
          %v479 = vmul.f32 %v473, %v476
          %v480 = vld [vmem:[%s2] sm:$0x1]
          %v482 = vperm.slane %v480, 0
          %v484 = vadd.f32 %v478, %v482
          %v485 = vadd.f32 %v479, %v482
          %v486 = vpack.c.bf16 %v484, %v484
          %v487 = vpack.c.bf16 %v485, %v485
          %488 = vst [vmem:[#allocation2] sm:$0xf] %v486
          %489 = vst [vmem:[#allocation2 + $0x4] sm:$0xf] %v487
          %490 = vst [vmem:[#allocation3] sm:$0xff] 0.0
          %491 = vst [vmem:[#allocation3 + $0x8] sm:$0xff] 0.0
        $region72: #{tpu_custom_call.1} parent=47 // pred_fallthru
          _
        %v492 = vld [vmem:[#allocation2] sm:$0xf]
        %v493 = vld [vmem:[#allocation2 + $0x4] sm:$0xf]
        %v494 = vld [vmem:[%s359] sm:$0xff]
        %v495 = vld [vmem:[%s359 + $0x8] sm:$0xff]
        %v496 = vld [vmem:[%s359 + $0x10] sm:$0xff]
        %v497 = vld [vmem:[%s359 + $0x18] sm:$0xff]
        %v498 = vld [vmem:[%s359 + $0x20] sm:$0xff]
        %v499 = vld [vmem:[%s359 + $0x28] sm:$0xff]
        %v500 = vld [vmem:[%s359 + $0x30] sm:$0xff]
        %v501 = vld [vmem:[%s359 + $0x38] sm:$0xff]
        %v502 = vld [vmem:[%s359 + $0x40] sm:$0xff]
        %v503 = vld [vmem:[%s359 + $0x48] sm:$0xff]
        %v504 = vld [vmem:[%s359 + $0x50] sm:$0xff]
        %v505 = vld [vmem:[%s359 + $0x58] sm:$0xff]
        %v506 = vld [vmem:[%s359 + $0x60] sm:$0xff]
        %v507 = vld [vmem:[%s359 + $0x68] sm:$0xff]
        %v508 = vld [vmem:[%s359 + $0x70] sm:$0xff]
        %v509 = vld [vmem:[%s359 + $0x78] sm:$0xff]
        %v510 = vld [vmem:[%s369] sm:$0x3]
        %v512 = vperm.slane %v510, 0
        %v513 = vperm.slane %v510, 1
        %v518 = vunpack.c.l.b16 %v492
        %v519 = vunpack.c.l.b16 %v493
        %v520 = vpack.c.b16 %v519, %v518
        %v538 = vunpack.c.l.b16 %v494
        %v539 = vunpack.c.h.b16 %v494
        %v540 = vunpack.c.l.b16 %v495
        %v541 = vunpack.c.h.b16 %v495
        %v542 = vunpack.c.l.b16 %v496
        %v543 = vunpack.c.h.b16 %v496
        %v544 = vunpack.c.l.b16 %v497
        %v545 = vunpack.c.h.b16 %v497
        %v546 = vunpack.c.l.b16 %v498
        %v547 = vunpack.c.h.b16 %v498
        %v548 = vunpack.c.l.b16 %v499
        %v549 = vunpack.c.h.b16 %v499
        %v550 = vunpack.c.l.b16 %v500
        %v551 = vunpack.c.h.b16 %v500
        %v552 = vunpack.c.l.b16 %v501
        %v553 = vunpack.c.h.b16 %v501
        %v554 = vunpack.c.l.b16 %v502
        %v555 = vunpack.c.h.b16 %v502
        %v556 = vunpack.c.l.b16 %v503
        %v557 = vunpack.c.h.b16 %v503
        %v558 = vunpack.c.l.b16 %v504
        %v559 = vunpack.c.h.b16 %v504
        %v560 = vunpack.c.l.b16 %v505
        %v561 = vunpack.c.h.b16 %v505
        %v562 = vunpack.c.l.b16 %v506
        %v563 = vunpack.c.h.b16 %v506
        %v564 = vunpack.c.l.b16 %v507
        %v565 = vunpack.c.h.b16 %v507
        %v566 = vunpack.c.l.b16 %v508
        %v567 = vunpack.c.h.b16 %v508
        %v568 = vunpack.c.l.b16 %v509
        %v569 = vunpack.c.h.b16 %v509
        %v570 = vpack.c.b16 %v540, %v538
        %v571 = vpack.c.b16 %v541, %v539
        %v572 = vpack.c.b16 %v544, %v542
        %v573 = vpack.c.b16 %v545, %v543
        %v574 = vpack.c.b16 %v548, %v546
        %v575 = vpack.c.b16 %v549, %v547
        %v576 = vpack.c.b16 %v552, %v550
        %v577 = vpack.c.b16 %v553, %v551
        %v578 = vpack.c.b16 %v556, %v554
        %v579 = vpack.c.b16 %v557, %v555
        %v580 = vpack.c.b16 %v560, %v558
        %v581 = vpack.c.b16 %v561, %v559
        %v582 = vpack.c.b16 %v564, %v562
        %v583 = vpack.c.b16 %v565, %v563
        %v584 = vpack.c.b16 %v568, %v566
        %v585 = vpack.c.b16 %v569, %v567
        %602 = vmatpush.bf16.msra.mxu0 %v584
        %603 = vmatpush.bf16.msra.mxu0 %v582
        %604 = vmatpush.bf16.msra.mxu0 %v580
        %605 = vmatpush.bf16.msra.mxu0 %v578
        %606 = vmatpush.bf16.msra.mxu0 %v576
        %607 = vmatpush.bf16.msra.mxu0 %v574
        %608 = vmatpush.bf16.msra.mxu0 %v572
        %609 = vmatpush.bf16.msra.mxu0 %v570
        %610 = vmatmul.bf16.gmra.mxu0 %v520
        %v611 = vpop.f32.mrf.mxu0
        %v612 = vadd.f32 %v512, %v611
        %v613 = vpop.f32.mrf.mxu0
        %v614 = vadd.f32 %v512, %v613
        %615 = vdwg.mxu0
        %616 = vmatpush.bf16.msra.mxu0 %v585
        %617 = vmatpush.bf16.msra.mxu0 %v583
        %618 = vmatpush.bf16.msra.mxu0 %v581
        %619 = vmatpush.bf16.msra.mxu0 %v579
        %620 = vmatpush.bf16.msra.mxu0 %v577
        %621 = vmatpush.bf16.msra.mxu0 %v575
        %622 = vmatpush.bf16.msra.mxu0 %v573
        %623 = vmatpush.bf16.msra.mxu0 %v571
        %624 = vmatmul.bf16.gmra.mxu0 %v520
        %v625 = vpop.f32.mrf.mxu0
        %v626 = vadd.f32 %v513, %v625
        %v627 = vpop.f32.mrf.mxu0
        %v628 = vadd.f32 %v513, %v627
        %629 = vdwg.mxu0
        %v630 = vmul.f32 %v612, 0.5
        %v631 = vmul.f32 %v626, 0.5
        %v632 = vmul.f32 %v614, 0.5
        %v633 = vmul.f32 %v628, 0.5
        %v634 = vmul.f32 %v612, 0.70710677
        %v635 = vmul.f32 %v626, 0.70710677
        %v636 = vmul.f32 %v614, 0.70710677
        %v637 = vmul.f32 %v628, 0.70710677
        %v638 = vmul.f32 %v634, %v634
        %v639 = vmin.f32 16.0, %v638
        %v640 = vmul.f32 %v639, 2.1237322e-06
        %v641 = vadd.f32 %v640, 0.00028619796
        %v642 = vmul.f32 %v639, %v641
        %v643 = vadd.f32 %v642, 0.0036580483
        %v644 = vmul.f32 %v639, %v643
        %v645 = vadd.f32 %v644, 0.05243302
        %v646 = vmul.f32 %v639, %v645
        %v647 = vadd.f32 %v646, 0.18741608
        %v648 = vmul.f32 %v639, %v647
        %v649 = vadd.f32 %v648, 1.1283791
        %v650 = vmul.f32 %v634, %v649
        %v651 = vmul.f32 %v639, 3.8918573e-05
        %v652 = vadd.f32 %v651, 0.001143296
        %v653 = vmul.f32 %v639, %v652
        %v654 = vadd.f32 %v653, 0.014752088
        %v655 = vmul.f32 %v639, %v654
        %v656 = vadd.f32 %v655, 0.112945676
        %v657 = vmul.f32 %v639, %v656
        %v658 = vadd.f32 %v657, 0.4994258
        %v659 = vmul.f32 %v639, %v658
        %v660 = vadd.f32 %v659, 1.0
        %v661 = vrcp.pop %v660
        %v662 = vmul.f32 %v660, %v661
        %v663 = vsub.f32 1.0, %v662
        %v664 = vmul.f32 %v661, %v663
        %v665 = vadd.f32 %v661, %v664
        %vm666 = vweird.f32 %v660
        %vm667 = vweird.f32 %v661
        %vm668 = vmor %vm666, %vm667
        %v669 = vsel %vm668, %v661, %v665
        %v670 = vand.u32 2147483647, %v660
        %vm671 = vcmp.eq.f32.partialorder %v670, 8.507059e+37
        %v672 = vand.u32 %v660, 2147483648
        %v673 = vor.u32 1.1754944e-38, %v672
        %v674 = vsel %vm671, %v673, %v669
        %v675 = vmul.f32 %v650, %v674
        %v676 = vmin.f32 %v675, 1.0
        %v677 = vmax.f32 %v676, -1.0
        %v678 = vmul.f32 %v635, %v635
        %v679 = vmin.f32 16.0, %v678
        %v680 = vmul.f32 %v679, 2.1237322e-06
        %v681 = vadd.f32 %v680, 0.00028619796
        %v682 = vmul.f32 %v679, %v681
        %v683 = vadd.f32 %v682, 0.0036580483
        %v684 = vmul.f32 %v679, %v683
        %v685 = vadd.f32 %v684, 0.05243302
        %v686 = vmul.f32 %v679, %v685
        %v687 = vadd.f32 %v686, 0.18741608
        %v688 = vmul.f32 %v679, %v687
        %v689 = vadd.f32 %v688, 1.1283791
        %v690 = vmul.f32 %v635, %v689
        %v691 = vmul.f32 %v679, 3.8918573e-05
        %v692 = vadd.f32 %v691, 0.001143296
        %v693 = vmul.f32 %v679, %v692
        %v694 = vadd.f32 %v693, 0.014752088
        %v695 = vmul.f32 %v679, %v694
        %v696 = vadd.f32 %v695, 0.112945676
        %v697 = vmul.f32 %v679, %v696
        %v698 = vadd.f32 %v697, 0.4994258
        %v699 = vmul.f32 %v679, %v698
        %v700 = vadd.f32 %v699, 1.0
        %v701 = vrcp.pop %v700
        %v702 = vmul.f32 %v700, %v701
        %v703 = vsub.f32 1.0, %v702
        %v704 = vmul.f32 %v701, %v703
        %v705 = vadd.f32 %v701, %v704
        %vm706 = vweird.f32 %v700
        %vm707 = vweird.f32 %v701
        %vm708 = vmor %vm706, %vm707
        %v709 = vsel %vm708, %v701, %v705
        %v710 = vand.u32 2147483647, %v700
        %vm711 = vcmp.eq.f32.partialorder %v710, 8.507059e+37
        %v712 = vand.u32 %v700, 2147483648
        %v713 = vor.u32 1.1754944e-38, %v712
        %v714 = vsel %vm711, %v713, %v709
        %v715 = vmul.f32 %v690, %v714
        %v716 = vmin.f32 %v715, 1.0
        %v717 = vmax.f32 %v716, -1.0
        %v718 = vmul.f32 %v636, %v636
        %v719 = vmin.f32 16.0, %v718
        %v720 = vmul.f32 %v719, 2.1237322e-06
        %v721 = vadd.f32 %v720, 0.00028619796
        %v722 = vmul.f32 %v719, %v721
        %v723 = vadd.f32 %v722, 0.0036580483
        %v724 = vmul.f32 %v719, %v723
        %v725 = vadd.f32 %v724, 0.05243302
        %v726 = vmul.f32 %v719, %v725
        %v727 = vadd.f32 %v726, 0.18741608
        %v728 = vmul.f32 %v719, %v727
        %v729 = vadd.f32 %v728, 1.1283791
        %v730 = vmul.f32 %v636, %v729
        %v731 = vmul.f32 %v719, 3.8918573e-05
        %v732 = vadd.f32 %v731, 0.001143296
        %v733 = vmul.f32 %v719, %v732
        %v734 = vadd.f32 %v733, 0.014752088
        %v735 = vmul.f32 %v719, %v734
        %v736 = vadd.f32 %v735, 0.112945676
        %v737 = vmul.f32 %v719, %v736
        %v738 = vadd.f32 %v737, 0.4994258
        %v739 = vmul.f32 %v719, %v738
        %v740 = vadd.f32 %v739, 1.0
        %v741 = vrcp.pop %v740
        %v742 = vmul.f32 %v740, %v741
        %v743 = vsub.f32 1.0, %v742
        %v744 = vmul.f32 %v741, %v743
        %v745 = vadd.f32 %v741, %v744
        %vm746 = vweird.f32 %v740
        %vm747 = vweird.f32 %v741
        %vm748 = vmor %vm746, %vm747
        %v749 = vsel %vm748, %v741, %v745
        %v750 = vand.u32 2147483647, %v740
        %vm751 = vcmp.eq.f32.partialorder %v750, 8.507059e+37
        %v752 = vand.u32 %v740, 2147483648
        %v753 = vor.u32 1.1754944e-38, %v752
        %v754 = vsel %vm751, %v753, %v749
        %v755 = vmul.f32 %v730, %v754
        %v756 = vmin.f32 %v755, 1.0
        %v757 = vmax.f32 %v756, -1.0
        %v758 = vmul.f32 %v637, %v637
        %v759 = vmin.f32 16.0, %v758
        %v760 = vmul.f32 %v759, 2.1237322e-06
        %v761 = vadd.f32 %v760, 0.00028619796
        %v762 = vmul.f32 %v759, %v761
        %v763 = vadd.f32 %v762, 0.0036580483
        %v764 = vmul.f32 %v759, %v763
        %v765 = vadd.f32 %v764, 0.05243302
        %v766 = vmul.f32 %v759, %v765
        %v767 = vadd.f32 %v766, 0.18741608
        %v768 = vmul.f32 %v759, %v767
        %v769 = vadd.f32 %v768, 1.1283791
        %v770 = vmul.f32 %v637, %v769
        %v771 = vmul.f32 %v759, 3.8918573e-05
        %v772 = vadd.f32 %v771, 0.001143296
        %v773 = vmul.f32 %v759, %v772
        %v774 = vadd.f32 %v773, 0.014752088
        %v775 = vmul.f32 %v759, %v774
        %v776 = vadd.f32 %v775, 0.112945676
        %v777 = vmul.f32 %v759, %v776
        %v778 = vadd.f32 %v777, 0.4994258
        %v779 = vmul.f32 %v759, %v778
        %v780 = vadd.f32 %v779, 1.0
        %v781 = vrcp.pop %v780
        %v782 = vmul.f32 %v780, %v781
        %v783 = vsub.f32 1.0, %v782
        %v784 = vmul.f32 %v781, %v783
        %v785 = vadd.f32 %v781, %v784
        %vm786 = vweird.f32 %v780
        %vm787 = vweird.f32 %v781
        %vm788 = vmor %vm786, %vm787
        %v789 = vsel %vm788, %v781, %v785
        %v790 = vand.u32 2147483647, %v780
        %vm791 = vcmp.eq.f32.partialorder %v790, 8.507059e+37
        %v792 = vand.u32 %v780, 2147483648
        %v793 = vor.u32 1.1754944e-38, %v792
        %v794 = vsel %vm791, %v793, %v789
        %v795 = vmul.f32 %v770, %v794
        %v796 = vmin.f32 %v795, 1.0
        %v797 = vmax.f32 %v796, -1.0
        %v798 = vadd.f32 %v677, 1.0
        %v799 = vadd.f32 %v717, 1.0
        %v800 = vadd.f32 %v757, 1.0
        %v801 = vadd.f32 %v797, 1.0
        %v802 = vmul.f32 %v630, %v798
        %v803 = vmul.f32 %v631, %v799
        %v804 = vmul.f32 %v632, %v800
        %v805 = vmul.f32 %v633, %v801
        %v806 = vld [vmem:[#allocation3] sm:$0xff]
        %v807 = vld [vmem:[#allocation3 + $0x8] sm:$0xff]
        %v808 = vpack.c.bf16 %v804, %v802
        %v809 = vpack.c.bf16 %v805, %v803
        %v810 = vld [vmem:[%s379] sm:$0xf]
        %v811 = vld [vmem:[%s379 + $0x4] sm:$0xf]
        %v812 = vld [vmem:[%s379 + $0x8] sm:$0xf]
        %v813 = vld [vmem:[%s379 + $0xc] sm:$0xf]
        %v814 = vld [vmem:[%s379 + $0x10] sm:$0xf]
        %v815 = vld [vmem:[%s379 + $0x14] sm:$0xf]
        %v816 = vld [vmem:[%s379 + $0x18] sm:$0xf]
        %v817 = vld [vmem:[%s379 + $0x1c] sm:$0xf]
        %v818 = vld [vmem:[%s379 + $0x20] sm:$0xf]
        %v819 = vld [vmem:[%s379 + $0x24] sm:$0xf]
        %v820 = vld [vmem:[%s379 + $0x28] sm:$0xf]
        %v821 = vld [vmem:[%s379 + $0x2c] sm:$0xf]
        %v822 = vld [vmem:[%s379 + $0x30] sm:$0xf]
        %v823 = vld [vmem:[%s379 + $0x34] sm:$0xf]
        %v824 = vld [vmem:[%s379 + $0x38] sm:$0xf]
        %v825 = vld [vmem:[%s379 + $0x3c] sm:$0xf]
        %v826 = vld [vmem:[%s379 + $0x40] sm:$0xf]
        %v827 = vld [vmem:[%s379 + $0x44] sm:$0xf]
        %v828 = vld [vmem:[%s379 + $0x48] sm:$0xf]
        %v829 = vld [vmem:[%s379 + $0x4c] sm:$0xf]
        %v830 = vld [vmem:[%s379 + $0x50] sm:$0xf]
        %v831 = vld [vmem:[%s379 + $0x54] sm:$0xf]
        %v832 = vld [vmem:[%s379 + $0x58] sm:$0xf]
        %v833 = vld [vmem:[%s379 + $0x5c] sm:$0xf]
        %v834 = vld [vmem:[%s379 + $0x60] sm:$0xf]
        %v835 = vld [vmem:[%s379 + $0x64] sm:$0xf]
        %v836 = vld [vmem:[%s379 + $0x68] sm:$0xf]
        %v837 = vld [vmem:[%s379 + $0x6c] sm:$0xf]
        %v838 = vld [vmem:[%s379 + $0x70] sm:$0xf]
        %v839 = vld [vmem:[%s379 + $0x74] sm:$0xf]
        %v840 = vld [vmem:[%s379 + $0x78] sm:$0xf]
        %v841 = vld [vmem:[%s379 + $0x7c] sm:$0xf]
        %v874 = vunpack.c.l.b16 %v810
        %v875 = vunpack.c.l.b16 %v811
        %v876 = vunpack.c.l.b16 %v812
        %v877 = vunpack.c.l.b16 %v813
        %v878 = vunpack.c.l.b16 %v814
        %v879 = vunpack.c.l.b16 %v815
        %v880 = vunpack.c.l.b16 %v816
        %v881 = vunpack.c.l.b16 %v817
        %v882 = vunpack.c.l.b16 %v818
        %v883 = vunpack.c.l.b16 %v819
        %v884 = vunpack.c.l.b16 %v820
        %v885 = vunpack.c.l.b16 %v821
        %v886 = vunpack.c.l.b16 %v822
        %v887 = vunpack.c.l.b16 %v823
        %v888 = vunpack.c.l.b16 %v824
        %v889 = vunpack.c.l.b16 %v825
        %v890 = vunpack.c.l.b16 %v826
        %v891 = vunpack.c.l.b16 %v827
        %v892 = vunpack.c.l.b16 %v828
        %v893 = vunpack.c.l.b16 %v829
        %v894 = vunpack.c.l.b16 %v830
        %v895 = vunpack.c.l.b16 %v831
        %v896 = vunpack.c.l.b16 %v832
        %v897 = vunpack.c.l.b16 %v833
        %v898 = vunpack.c.l.b16 %v834
        %v899 = vunpack.c.l.b16 %v835
        %v900 = vunpack.c.l.b16 %v836
        %v901 = vunpack.c.l.b16 %v837
        %v902 = vunpack.c.l.b16 %v838
        %v903 = vunpack.c.l.b16 %v839
        %v904 = vunpack.c.l.b16 %v840
        %v905 = vunpack.c.l.b16 %v841
        %v906 = vpack.c.b16 %v875, %v874
        %v907 = vpack.c.b16 %v877, %v876
        %v908 = vpack.c.b16 %v879, %v878
        %v909 = vpack.c.b16 %v881, %v880
        %v910 = vpack.c.b16 %v883, %v882
        %v911 = vpack.c.b16 %v885, %v884
        %v912 = vpack.c.b16 %v887, %v886
        %v913 = vpack.c.b16 %v889, %v888
        %v914 = vpack.c.b16 %v891, %v890
        %v915 = vpack.c.b16 %v893, %v892
        %v916 = vpack.c.b16 %v895, %v894
        %v917 = vpack.c.b16 %v897, %v896
        %v918 = vpack.c.b16 %v899, %v898
        %v919 = vpack.c.b16 %v901, %v900
        %v920 = vpack.c.b16 %v903, %v902
        %v921 = vpack.c.b16 %v905, %v904
        %938 = vmatpush.bf16.msra.mxu0 %v913
        %939 = vmatpush.bf16.msra.mxu0 %v912
        %940 = vmatpush.bf16.msra.mxu0 %v911
        %941 = vmatpush.bf16.msra.mxu0 %v910
        %942 = vmatpush.bf16.msra.mxu0 %v909
        %943 = vmatpush.bf16.msra.mxu0 %v908
        %944 = vmatpush.bf16.msra.mxu0 %v907
        %945 = vmatpush.bf16.msra.mxu0 %v906
        %946 = vmatmul.bf16.gmra.mxu0 %v808
        %v947 = vpop.f32.mrf.mxu0
        %v948 = vadd.f32 0.0, %v947
        %v949 = vpop.f32.mrf.mxu0
        %v950 = vadd.f32 0.0, %v949
        %951 = vdwg.mxu0
        %952 = vmatpush.bf16.msra.mxu0 %v921
        %953 = vmatpush.bf16.msra.mxu0 %v920
        %954 = vmatpush.bf16.msra.mxu0 %v919
        %955 = vmatpush.bf16.msra.mxu0 %v918
        %956 = vmatpush.bf16.msra.mxu0 %v917
        %957 = vmatpush.bf16.msra.mxu0 %v916
        %958 = vmatpush.bf16.msra.mxu0 %v915
        %959 = vmatpush.bf16.msra.mxu0 %v914
        %960 = vmatmul.bf16.gmra.mxu0 %v809
        %v961 = vpop.f32.mrf.mxu0
        %v962 = vadd.f32 %v948, %v961
        %v963 = vpop.f32.mrf.mxu0
        %v964 = vadd.f32 %v950, %v963
        %965 = vdwg.mxu0
        %v966 = vadd.f32 %v806, %v962
        %v967 = vadd.f32 %v807, %v964
        %968 = vst [vmem:[#allocation3] sm:$0xff] %v966
        %969 = vst [vmem:[#allocation3 + $0x8] sm:$0xff] %v967
        %p970 = scmp.eq.s32.totalorder %s26, 1
        // Predicated region
        $region73: #{tpu_custom_call.1} parent=47 // pred_check
          %p971 = pneg %p970
        $region74: #{tpu_custom_call.1} parent=47 // pred_check_branch
          %973 = sbr.rel (%p971) target = $region76
        $region75: #{tpu_custom_call.1} parent=47 // pred_region
          %v974 = vld [vmem:[#allocation3] sm:$0xff]
          %v975 = vld [vmem:[#allocation3 + $0x8] sm:$0xff]
          %v976 = vld [vmem:[%s6] sm:$0x1]
          %v978 = vperm.slane %v976, 0
          %v980 = vadd.f32 %v974, %v978
          %v981 = vadd.f32 %v975, %v978
          %982 = vst [vmem:[#allocation12] sm:$0xff] %v980
          %983 = vst [vmem:[#allocation12 + $0x8] sm:$0xff] %v981
        $region76: #{tpu_custom_call.1} parent=47 // pred_fallthru
          _
        // Predicated region
        $region77: #{tpu_custom_call.1} parent=47 // pred_check
          %p984 = pneg %p218
        $region78: #{tpu_custom_call.1} parent=47 // pred_check_branch
          %986 = sbr.rel (%p984) target = $region80
        $region79: #{tpu_custom_call.1} parent=47 // pred_region
          %s987 = smul.u32 2, %s25
          %989 = vsyncadd [#allocation6], 0
          %s990 = smul.addr %s987, 8
          %s991 = scalar_lea.hbm %s7, %s990
          %s992 = sshll.u32 [#allocation12], 4
          %s993 = int_to_ptr.vmem [resolvable:$true] %s992
          %s994 = sshll.u32 %s991, 4
          %s995 = int_to_ptr.hbm [resolvable:$true] %s994
          %1000 = dma.vmem_to_hbm [thread:$0]  %s993, 256, %s995, [#allocation6], 128, 128, 8
        $region80: #{tpu_custom_call.1} parent=47 // pred_fallthru
          _
        // Predicated region
        $region81: #{tpu_custom_call.1} parent=47 // pred_check
          %p1001 = pneg %p218
        $region82: #{tpu_custom_call.1} parent=47 // pred_check_branch
          %1003 = sbr.rel (%p1001) target = $region84
        $region83: #{tpu_custom_call.1} parent=47 // pred_region
          %1005 = dma.done [#allocation6], 256
        $region84: #{tpu_custom_call.1} parent=47 // pred_fallthru
          _
      $region48: #{tpu_custom_call.1} parent=5 // pred_fallthru
        _
      %p1006 = scmp.le.s32.totalorder 2, %s16
      // Predicated region
      $region85: #{tpu_custom_call.1} parent=5 // pred_check
        %p1007 = pneg %p1006
      $region86: #{tpu_custom_call.1} parent=5 // pred_check_branch
        %1009 = sbr.rel (%p1007) target = $region88
      $region87: #{tpu_custom_call.1} parent=5 // pred_region
        %s1010 = ssub.s32 %s16, 2
      $region88: #{tpu_custom_call.1} parent=5 // pred_fallthru
        _
    $region6: #{tpu_custom_call.1} parent=1 // loop_footer
      %s20 = sadd.s32 1, %s16
    $region7: #{tpu_custom_call.1} parent=1 // loop_footer_branch
      %15 = sbr.rel target = $region3
    $region8: #{tpu_custom_call.1} parent=1 // loop_exit
      _
    %1011 = vsyncpa [#allocation5], 1
    %s1012 = scalar_lea.sflag [#allocation5], 1
    %1013 = vsyncpa %s1012, 1
    %1014 = vsyncpa [#allocation8], 1
    %1015 = vsyncpa [#allocation6], 1
    %s1016 = scalar_lea.sflag [#allocation6], 1
    %1017 = vsyncpa %s1016, 1

</llo_original>
